<compile_context>
chip_gen: v7x
topology: tpu7x:2x2x1
jax: 0.10.0
libtpu: 0.0.40
codegen_flags: <defaults>
</compile_context>

<pallas_src>
import functools

import jax
import jax.numpy as jnp
from jax.experimental import pallas as pl
from jax.experimental.pallas import tpu as pltpu


def channel_attention_kernel(x_ref, w1t_ref, w2t_ref, out_ref, acc_ref, *, inv_hw):
    # x_ref   : (C, T_S)     one spatial tile of one batch element
    # w1t_ref : (C, hidden)  fc1 weight, pre-transposed (in, out) -- resident
    # w2t_ref : (hidden, C)  fc2 weight, pre-transposed (in, out) -- resident
    # out_ref : (1, C)       sigmoid channel attention for this batch element
    # acc_ref : (C, 128)     f32 partial-sum accumulator (persists across tiles)
    s = pl.program_id(1)

    @pl.when(s == 0)
    def _zero():
        acc_ref[...] = jnp.zeros_like(acc_ref)

    # Steady state: lane-chunked VALU accumulation. Load the tile once in its
    # native dtype; cast only the 128-lane chunk being added (keeps bf16 packed).
    x_tile = x_ref[...]                              # (C, T_S)
    t_s = x_tile.shape[1]
    acc = acc_ref[...]
    for k in range(t_s // 128):                      # static, fully unrolled
        acc = acc + x_tile[:, k * 128:(k + 1) * 128].astype(jnp.float32)
    acc_ref[...] = acc

    @pl.when(s == pl.num_programs(1) - 1)
    def _finalize():
        # Single cross-lane reduce + single scale by 1/(H*W) (true element count).
        avg = (jnp.sum(acc_ref[...], axis=-1) * inv_hw)[None, :]          # (1, C)
        # fc1 (1x1 conv == matmul over channels) + ReLU.
        h = jnp.maximum(
            jnp.dot(avg, w1t_ref[...].astype(jnp.float32),
                    preferred_element_type=jnp.float32), 0.0)             # (1, hidden)
        # fc2 + sigmoid.
        o = jnp.dot(h, w2t_ref[...].astype(jnp.float32),
                    preferred_element_type=jnp.float32)                   # (1, C)
        out_ref[...] = jax.nn.sigmoid(o).astype(out_ref.dtype)


def channel_attention(x, w1, w2, *, spatial_tile=None):
    """x: (B, C, H, W) NCHW; w1: (C//16, C); w2: (C, C//16). Returns (B, C, 1, 1)."""
    B, C, H, W = x.shape
    hidden = w1.shape[0]
    assert w1.shape == (hidden, C) and w2.shape == (C, hidden)

    hw = H * W
    x_flat = x.reshape(B, C, hw)

    if spatial_tile is None:
        # Multiple of 128 lanes; cap per-buffer bytes (~1 MiB) so double/triple
        # buffering fits the tightest VMEM budget (v5e 16 MiB scoped default,
        # v7x 64 MiB physical); never larger than the (padded) spatial extent.
        itemsize = jnp.dtype(x.dtype).itemsize
        max_t = max(128, ((1 << 20) // max(C * itemsize, 1)) // 128 * 128)
        spatial_tile = min(2048, max_t, pl.cdiv(hw, 128) * 128)
    assert spatial_tile % 128 == 0

    # Zero-pad the spatial axis to a multiple of the tile; zeros do not change
    # the pooled sum, and the kernel divides by the true H*W.
    hw_pad = pl.cdiv(hw, spatial_tile) * spatial_tile
    if hw_pad != hw:
        x_flat = jnp.pad(x_flat, ((0, 0), (0, 0), (0, hw_pad - hw)))
    n_s = hw_pad // spatial_tile

    w1_t = w1.T   # (C, hidden)
    w2_t = w2.T   # (hidden, C)

    kernel = functools.partial(channel_attention_kernel, inv_hw=1.0 / float(hw))

    out = pl.pallas_call(
        kernel,
        grid=(B, n_s),
        out_shape=jax.ShapeDtypeStruct((B, 1, C), x.dtype),
        in_specs=[
            # x: one batch element (squeezed), one spatial tile per step.
            pl.BlockSpec((None, C, spatial_tile), lambda b, s: (b, 0, s)),
            # Weights: constant index_map -> DMA'd once, pinned in VMEM.
            pl.BlockSpec((C, hidden), lambda b, s: (0, 0)),
            pl.BlockSpec((hidden, C), lambda b, s: (0, 0)),
        ],
        out_specs=pl.BlockSpec((None, 1, C), lambda b, s: (b, 0, 0)),
        scratch_shapes=[pltpu.VMEM((C, 128), jnp.float32)],
        compiler_params=pltpu.CompilerParams(
            dimension_semantics=("parallel", "arbitrary"),
            vmem_limit_bytes=32 * 1024 * 1024,
        ),
    )(x_flat, w1_t, w2_t)

    return out.reshape(B, C, 1, 1)


def channel_attention_ref(x, w1, w2):
    """Pure-JAX reference (mirrors the PyTorch forward)."""
    avg = jnp.mean(x.astype(jnp.float32), axis=(2, 3))          # (B, C)
    h = jnp.maximum(avg @ w1.T.astype(jnp.float32), 0.0)        # (B, C//16)
    o = h @ w2.T.astype(jnp.float32)                            # (B, C)
    return jax.nn.sigmoid(o)[:, :, None, None].astype(x.dtype)


if __name__ == "__main__":
    # Channels must be >= 16 (module hard-codes in_planes // 16). B=2, C=32
    # (hidden=2), H=W=16 -> H*W=256; spatial_tile=128 forces 2 accumulation
    # steps per batch element, exercising the grid/accumulator path.
    B, C, H, W = 2, 32, 16, 16
    hidden = C // 16

    key = jax.random.PRNGKey(0)
    kx, k1, k2 = jax.random.split(key, 3)

    x = jax.random.normal(kx, (B, C, H, W), dtype=jnp.float32)
    # Conv2d 1x1 weight shapes (out, in, 1, 1) -> (out, in).
    w1 = jax.random.normal(k1, (hidden, C), dtype=jnp.float32) * 0.1   # fc1.weight
    w2 = jax.random.normal(k2, (C, hidden), dtype=jnp.float32) * 0.1   # fc2.weight

    out = channel_attention(x, w1, w2, spatial_tile=128)
    out = jax.block_until_ready(out)

    ref = channel_attention_ref(x, w1, w2)
    assert out.shape == (B, C, 1, 1)
    assert jnp.allclose(out, ref, atol=1e-5, rtol=1e-5), float(
        jnp.max(jnp.abs(out - ref)))

    print("KERNEL_OK")
</pallas_src>

<mosaic_0001>
module attributes {stable_mosaic.version = 11 : i64} {
  func.func @channel_attention_kernel(%arg0: i32, %arg1: i32, %arg2: memref<1x32x128xf32, #tpu.memory_space<vmem>>, %arg3: memref<32x2xf32, #tpu.memory_space<vmem>>, %arg4: memref<2x32xf32, #tpu.memory_space<vmem>>, %arg5: memref<1x1x32xf32, #tpu.memory_space<vmem>>, %arg6: memref<32x128xf32, #tpu.memory_space<vmem>>) attributes {dimension_semantics = [#tpu.dimension_semantics<parallel>, #tpu.dimension_semantics<arbitrary>], iteration_bounds = array<i64: 2, 2>, scalar_prefetch = 0 : i64, scratch_operands = 1 : i64, tpu.core_type = #tpu.core_type<tc>, window_params = [{transform_indices = @transform_0, window_bounds = array<i64: 1, 32, 128>}, {pipeline_mode = #tpu.pipeline_mode<synchronous>, transform_indices = @transform_1, window_bounds = array<i64: 32, 2>}, {pipeline_mode = #tpu.pipeline_mode<synchronous>, transform_indices = @transform_2, window_bounds = array<i64: 2, 32>}, {transform_indices = @transform_3, window_bounds = array<i64: 1, 1, 32>}]} {
    %c0_i32 = arith.constant 0 : i32
    %0 = arith.cmpi eq, %arg1, %c0_i32 : i32
    %1 = arith.extui %0 : i1 to i32
    %c0_i32_0 = arith.constant 0 : i32
    %2 = arith.cmpi ne, %1, %c0_i32_0 : i32
    scf.if %2 {
      %cst = arith.constant 0.000000e+00 : f32
      %11 = vector.broadcast %cst : f32 to vector<32x128xf32>
      %c0_8 = arith.constant 0 : index
      %c0_9 = arith.constant 0 : index
      %12 = vector.load %arg6[%c0_8, %c0_9] : memref<32x128xf32, #tpu.memory_space<vmem>>, vector<32x128xf32>
      tpu.vector_store %arg6[%c0_8, %c0_9], %11 {strides = array<i32>} : memref<32x128xf32, #tpu.memory_space<vmem>>, vector<32x128xf32>,
    } else {
    }
    %c0 = arith.constant 0 : index
    %c0_1 = arith.constant 0 : index
    %c0_2 = arith.constant 0 : index
    %3 = vector.load %arg2[%c0, %c0_1, %c0_2] : memref<1x32x128xf32, #tpu.memory_space<vmem>>, vector<1x32x128xf32>
    %4 = vector.shape_cast %3 : vector<1x32x128xf32> to vector<32x128xf32>
    %c0_3 = arith.constant 0 : index
    %c0_4 = arith.constant 0 : index
    %5 = vector.load %arg6[%c0_3, %c0_4] : memref<32x128xf32, #tpu.memory_space<vmem>>, vector<32x128xf32>
    %6 = arith.addf %5, %4 : vector<32x128xf32>
    %c0_5 = arith.constant 0 : index
    %c0_6 = arith.constant 0 : index
    %7 = vector.load %arg6[%c0_5, %c0_6] : memref<32x128xf32, #tpu.memory_space<vmem>>, vector<32x128xf32>
    tpu.vector_store %arg6[%c0_5, %c0_6], %6 {strides = array<i32>} : memref<32x128xf32, #tpu.memory_space<vmem>>, vector<32x128xf32>,
    %c1_i32 = arith.constant 1 : i32
    %8 = arith.cmpi eq, %arg1, %c1_i32 : i32
    %9 = arith.extui %8 : i1 to i32
    %c0_i32_7 = arith.constant 0 : i32
    %10 = arith.cmpi ne, %9, %c0_i32_7 : i32
    scf.if %10 {
      %c0_8 = arith.constant 0 : index
      %c0_9 = arith.constant 0 : index
      %11 = vector.load %arg6[%c0_8, %c0_9] : memref<32x128xf32, #tpu.memory_space<vmem>>, vector<32x128xf32>
      %cst = arith.constant dense<0.000000e+00> : vector<32xf32>
      %12 = vector.multi_reduction <add>, %11, %cst [1] : vector<32x128xf32> to vector<32xf32>
      %cst_10 = arith.constant 3.906250e-03 : f32
      %13 = vector.broadcast %cst_10 : f32 to vector<32xf32>
      %14 = arith.mulf %12, %13 : vector<32xf32>
      %15 = vector.shape_cast %14 : vector<32xf32> to vector<1x32xf32>
      %c0_11 = arith.constant 0 : index
      %c0_12 = arith.constant 0 : index
      %16 = vector.load %arg3[%c0_11, %c0_12] : memref<32x2xf32, #tpu.memory_space<vmem>>, vector<32x2xf32>
      %cst_13 = arith.constant dense<0.000000e+00> : vector<1x2xf32>
      %17 = tpu.matmul %15, %16, %cst_13 {dimension_numbers = #tpu.dot_dimension_numbers<[1], [0], [0], [1], [0, 0, 1, 1], [], []>} : vector<1x32xf32>, vector<32x2xf32>, vector<1x2xf32> -> vector<1x2xf32>
      %cst_14 = arith.constant 0.000000e+00 : f32
      %18 = vector.broadcast %cst_14 : f32 to vector<1x2xf32>
      %19 = arith.maximumf %17, %18 : vector<1x2xf32>
      %c0_15 = arith.constant 0 : index
      %c0_16 = arith.constant 0 : index
      %20 = vector.load %arg4[%c0_15, %c0_16] : memref<2x32xf32, #tpu.memory_space<vmem>>, vector<2x32xf32>
      %cst_17 = arith.constant dense<0.000000e+00> : vector<1x32xf32>
      %21 = tpu.matmul %19, %20, %cst_17 {dimension_numbers = #tpu.dot_dimension_numbers<[1], [0], [0], [1], [0, 0, 1, 1], [], []>} : vector<1x2xf32>, vector<2x32xf32>, vector<1x32xf32> -> vector<1x32xf32>
      %22 = arith.negf %21 : vector<1x32xf32>
      %23 = math.exp %22 : vector<1x32xf32>
      %cst_18 = arith.constant 1.000000e+00 : f32
      %24 = vector.broadcast %cst_18 : f32 to vector<1x32xf32>
      %25 = arith.addf %24, %23 : vector<1x32xf32>
      %26 = arith.divf %24, %25 : vector<1x32xf32>
      %c0_19 = arith.constant 0 : index
      %c0_20 = arith.constant 0 : index
      %c0_21 = arith.constant 0 : index
      %27 = vector.load %arg5[%c0_19, %c0_20, %c0_21] : memref<1x1x32xf32, #tpu.memory_space<vmem>>, vector<1x1x32xf32>
      %28 = vector.shape_cast %27 : vector<1x1x32xf32> to vector<1x32xf32>
      %29 = vector.shape_cast %26 : vector<1x32xf32> to vector<1x1x32xf32>
      tpu.vector_store %arg5[%c0_19, %c0_20, %c0_21], %29 {strides = array<i32>} : memref<1x1x32xf32, #tpu.memory_space<vmem>>, vector<1x1x32xf32>,
    } else {
    }
    return
  }
  func.func @transform_0(%arg0: i32, %arg1: i32) -> (i32, i32, i32) {
    %c0_i32 = arith.constant 0 : i32
    %c0_i32_0 = arith.constant 0 : i32
    return %arg0, %c0_i32, %arg1 : i32, i32, i32
  }
  func.func @transform_1(%arg0: i32, %arg1: i32) -> (i32, i32) {
    %c0_i32 = arith.constant 0 : i32
    %c0_i32_0 = arith.constant 0 : i32
    %c0_i32_1 = arith.constant 0 : i32
    return %c0_i32, %c0_i32_0 : i32, i32
  }
  func.func @transform_2(%arg0: i32, %arg1: i32) -> (i32, i32) {
    %c0_i32 = arith.constant 0 : i32
    %c0_i32_0 = arith.constant 0 : i32
    %c0_i32_1 = arith.constant 0 : i32
    return %c0_i32, %c0_i32_0 : i32, i32
  }
  func.func @transform_3(%arg0: i32, %arg1: i32) -> (i32, i32, i32) {
    %c0_i32 = arith.constant 0 : i32
    %c0_i32_0 = arith.constant 0 : i32
    %c0_i32_1 = arith.constant 0 : i32
    return %arg0, %c0_i32, %c0_i32_0 : i32, i32, i32
  }
}

</mosaic_0001>

<llo_original>
// kernel: tpu_custom_call.1
$region0: #{tpu_custom_call.1}
  #allocation0 [shape = 'u32[]', space=smem, size = 0x4, offset = 0x4, fixed_abs, tag = 'smem constant byte address 0x4 - core index']
  #allocation1 [shape = 'u32[144,128]{1,0:T(1,128)}', space=vmem, size = 0x12000, scoped, tag = 'internal scratch']
  #allocation2 [shape = 'f32[32,128]{1,0:T(8,128)}', space=vmem, size = 0x4000, scoped, tag = 'scratch operand']
  %s0 = inlined_call_operand.hbm [shape: f32[2,32,256], index: 0, kind: input, shape index: {}]
  %s1 = inlined_call_operand.vmem [shape: f32[32,2], index: 1, kind: input, shape index: {}]
  %s2 = inlined_call_operand.vmem [shape: f32[2,32], index: 2, kind: input, shape index: {}]
  %s3 = inlined_call_operand.hbm [shape: f32[2,1,32], index: 3, kind: output, shape index: {}]
  %s4 = sld [smem:[#allocation0]]
  $region57: #{tpu_custom_call.1} parent=0
    _
  %s6 = ssub.s32 1, %s4
  %s7 = scalar_select 0, %s6, %s4
  $region1: #{tpu_custom_call.1} parent=0
    #allocation3 [shape = 'u8[32768]{0}', space=vmem, size = 0x8000, scoped, tag = 'input window, operand 0']
    #allocation4 [shape = 's32[2]{0}', space=sflag, size = 0x8, scoped, tag = 'scoped memory for tpu_custom_call.1']
    #allocation5 [shape = 's32[2]{0}', space=sflag, size = 0x8, scoped, tag = 'scoped memory for tpu_custom_call.1']
    #allocation6 [shape = 'u8[1024]{0}', space=vmem, size = 0x400, scoped, tag = 'output window, operand 0']
    %8 = vsyncpa [#allocation4], 0
    %s9 = scalar_lea.sflag [#allocation4], 1
    %10 = vsyncpa %s9, 0
    %11 = vsyncpa [#allocation5], 0
    %s12 = scalar_lea.sflag [#allocation5], 1
    %13 = vsyncpa %s12, 0
    loop: start=0, step=1, limit=6
    $region2: #{tpu_custom_call.1} parent=1 // loop_pre_header
      _
    $region3: #{tpu_custom_call.1} parent=1 // loop_header
      %s15 = sphi 0, %s19
      %p16 = scmp.ge.s32.totalorder %s15, 6
      %s22 = sphi 0, %s34
      %s23 = sphi 0, %s30
      %s24 = sphi 0, %s22
      %s25 = sphi 0, %s23
      %s26 = sphi 0, %s24
      %s27 = sphi 0, %s25
      %s39 = sphi 0, %s41
      %s42 = sphi 0, %s39
      %s43 = sphi 0, %s42
      %s59 = sphi 0, %s43
      %s63 = sphi 0, %s63
      %s65 = sphi 0, %s63
      %s66 = sphi 0, %s65
      %s80 = sphi 0, %s66
      %s84 = sphi 0, %s84
      %s86 = sphi 0, %s84
      %s87 = sphi 0, %s86
      %s101 = sphi 0, %s87
      %s107 = sphi 0, %s109
      %s110 = sphi 0, %s107
      %s111 = sphi 0, %s110
      %s127 = sphi 0, %s111
    $region4: #{tpu_custom_call.1} parent=1 // loop_header_branch
      %18 = sbr.rel (%p16) target = $region8
    $region5: #{tpu_custom_call.1} parent=1 // loop_body
      %s20 = ssub.s32 %s15, 1
      %s21 = ssub.s32 %s15, 2
      %s28 = sadd.s32 1, %s23
      %p29 = scmp.ge.s32.totalorder %s28, 2
      %s30 = scalar_select %p29, 0, %s28
      %s31 = sadd.s32 1, %s22
      %s32 = scalar_select %p29, %s31, %s22
      %p33 = scmp.ge.s32.totalorder %s32, 2
      %s34 = scalar_select %p33, 0, %s32
      %s35 = ssub.s32 %s22, %s34
      %s36 = ssub.s32 %s23, %s30
      %s37 = sor.u32 %s35, %s36
      %p38 = scmp.eq.s32.totalorder %s37, 0
      %s40 = sadd.s32 %s39, 1
      %s41 = scalar_select %p38, %s39, %s40
      %p44 = pneg %p38
      %p45 = scmp.eq.s32.totalorder %s15, 3
      %p46 = por %p44, %p45
      %p47 = scmp.ne.s32.totalorder %s39, %s42
      %p48 = scmp.eq.s32.totalorder %s15, 0
      %p49 = por %p47, %p48
      %p50 = scmp.ne.s32.totalorder %s39, %s42
      %p51 = scmp.eq.s32.totalorder %s20, 3
      %p52 = por %p50, %p51
      %p53 = scmp.ne.s32.totalorder %s42, %s43
      %p54 = scmp.eq.s32.totalorder %s20, 0
      %p55 = por %p53, %p54
      %p56 = scmp.ne.s32.totalorder %s42, %s43
      %p57 = scmp.eq.s32.totalorder %s21, 3
      %p58 = por %p56, %p57
      %p60 = scmp.ne.s32.totalorder %s43, %s59
      %p61 = scmp.eq.s32.totalorder %s21, 0
      %p62 = por %p60, %p61
      %s64 = sadd.s32 %s63, 1
      %p67 = scmp.eq.s32.totalorder %s15, 3
      %p68 = scmp.ne.s32.totalorder %s63, %s65
      %p69 = scmp.eq.s32.totalorder %s15, 0
      %p70 = por %p68, %p69
      %p71 = scmp.ne.s32.totalorder %s63, %s65
      %p72 = scmp.eq.s32.totalorder %s20, 3
      %p73 = por %p71, %p72
      %p74 = scmp.ne.s32.totalorder %s65, %s66
      %p75 = scmp.eq.s32.totalorder %s20, 0
      %p76 = por %p74, %p75
      %p77 = scmp.ne.s32.totalorder %s65, %s66
      %p78 = scmp.eq.s32.totalorder %s21, 3
      %p79 = por %p77, %p78
      %p81 = scmp.ne.s32.totalorder %s66, %s80
      %p82 = scmp.eq.s32.totalorder %s21, 0
      %p83 = por %p81, %p82
      %s85 = sadd.s32 %s84, 1
      %p88 = scmp.eq.s32.totalorder %s15, 3
      %p89 = scmp.ne.s32.totalorder %s84, %s86
      %p90 = scmp.eq.s32.totalorder %s15, 0
      %p91 = por %p89, %p90
      %p92 = scmp.ne.s32.totalorder %s84, %s86
      %p93 = scmp.eq.s32.totalorder %s20, 3
      %p94 = por %p92, %p93
      %p95 = scmp.ne.s32.totalorder %s86, %s87
      %p96 = scmp.eq.s32.totalorder %s20, 0
      %p97 = por %p95, %p96
      %p98 = scmp.ne.s32.totalorder %s86, %s87
      %p99 = scmp.eq.s32.totalorder %s21, 3
      %p100 = por %p98, %p99
      %p102 = scmp.ne.s32.totalorder %s87, %s101
      %p103 = scmp.eq.s32.totalorder %s21, 0
      %p104 = por %p102, %p103
      %s105 = ssub.s32 %s22, %s34
      %p106 = scmp.eq.s32.totalorder %s105, 0
      %s108 = sadd.s32 %s107, 1
      %s109 = scalar_select %p106, %s107, %s108
      %p112 = pneg %p106
      %p113 = scmp.eq.s32.totalorder %s15, 3
      %p114 = por %p112, %p113
      %p115 = scmp.ne.s32.totalorder %s107, %s110
      %p116 = scmp.eq.s32.totalorder %s15, 0
      %p117 = por %p115, %p116
      %p118 = scmp.ne.s32.totalorder %s107, %s110
      %p119 = scmp.eq.s32.totalorder %s20, 3
      %p120 = por %p118, %p119
      %p121 = scmp.ne.s32.totalorder %s110, %s111
      %p122 = scmp.eq.s32.totalorder %s20, 0
      %p123 = por %p121, %p122
      %p124 = scmp.ne.s32.totalorder %s110, %s111
      %p125 = scmp.eq.s32.totalorder %s21, 3
      %p126 = por %p124, %p125
      %p128 = scmp.ne.s32.totalorder %s111, %s127
      %p129 = scmp.eq.s32.totalorder %s21, 0
      %p130 = por %p128, %p129
      %p131 = scmp.le.s32.totalorder 1, %s15
      %p132 = scmp.lt.s32.totalorder %s15, 5
      %p133 = pnand %p131, %p132
      %p134 = pneg %p133
      // Predicated region
      $region9: #{tpu_custom_call.1} parent=5 // pred_check
        _
      $region10: #{tpu_custom_call.1} parent=5 // pred_check_branch
        %136 = sbr.rel (%p133) target = $region12
      $region11: #{tpu_custom_call.1} parent=5 // pred_region
        %s137 = ssub.s32 %s15, 1
        // Predicated region
        $region13: #{tpu_custom_call.1} parent=11 // pred_check
          %p138 = pneg %p76
        $region14: #{tpu_custom_call.1} parent=11 // pred_check_branch
          %140 = sbr.rel (%p138) target = $region16
        $region15: #{tpu_custom_call.1} parent=11 // pred_region
          _
        $region16: #{tpu_custom_call.1} parent=11 // pred_fallthru
          _
        // Predicated region
        $region17: #{tpu_custom_call.1} parent=11 // pred_check
          %p141 = pneg %p97
        $region18: #{tpu_custom_call.1} parent=11 // pred_check_branch
          %143 = sbr.rel (%p141) target = $region20
        $region19: #{tpu_custom_call.1} parent=11 // pred_region
          _
        $region20: #{tpu_custom_call.1} parent=11 // pred_fallthru
          _
      $region12: #{tpu_custom_call.1} parent=5 // pred_fallthru
        _
      %p144 = scmp.lt.s32.totalorder %s15, 4
      // Predicated region
      $region21: #{tpu_custom_call.1} parent=5 // pred_check
        %p145 = pneg %p144
      $region22: #{tpu_custom_call.1} parent=5 // pred_check_branch
        %147 = sbr.rel (%p145) target = $region24
      $region23: #{tpu_custom_call.1} parent=5 // pred_region
        // Predicated region
        $region25: #{tpu_custom_call.1} parent=23 // pred_check
          %p148 = pneg %p49
        $region26: #{tpu_custom_call.1} parent=23 // pred_check_branch
          %150 = sbr.rel (%p148) target = $region28
        $region27: #{tpu_custom_call.1} parent=23 // pred_region
          %s151 = sand.u32 %s39, 1
          %s152 = scalar_lea.sflag [#allocation4], %s151
          %s153 = sand.u32 %s39, 1
          %s154 = smul.addr %s153, 32
          %s155 = scalar_lea.vmem [#allocation3], %s154
          %s157 = ssub.s32 512, 512
          %158 = vsyncadd %s152, %s157
          %s159 = smul.addr %s22, 8
          %s160 = sadd.s32 %s23, %s159
          %s161 = smul.addr %s160, 128
          %s162 = scalar_lea.hbm %s0, %s161
          %s163 = sshll.u32 %s155, 4
          %s164 = int_to_ptr.vmem [resolvable:$true] %s163
          %169 = dma.hbm_to_vmem [thread:$0]  %s162, 512, %s164, %s152, 256, 128, 8
        $region28: #{tpu_custom_call.1} parent=23 // pred_fallthru
          _
      $region24: #{tpu_custom_call.1} parent=5 // pred_fallthru
        _
      %p170 = scmp.le.s32.totalorder 1, %s15
      %p171 = scmp.lt.s32.totalorder %s15, 5
      %p172 = pnand %p170, %p171
      %p173 = pneg %p172
      // Predicated region
      $region29: #{tpu_custom_call.1} parent=5 // pred_check
        _
      $region30: #{tpu_custom_call.1} parent=5 // pred_check_branch
        %175 = sbr.rel (%p172) target = $region32
      $region31: #{tpu_custom_call.1} parent=5 // pred_region
        %s176 = ssub.s32 %s15, 1
        %s177 = sand.u32 %s42, 1
        %s178 = scalar_lea.sflag [#allocation4], %s177
        %s179 = sand.u32 %s42, 1
        %s180 = smul.addr %s179, 32
        %s181 = scalar_lea.vmem [#allocation3], %s180
        // Predicated region
        $region33: #{tpu_custom_call.1} parent=31 // pred_check
          %p182 = pneg %p55
        $region34: #{tpu_custom_call.1} parent=31 // pred_check_branch
          %184 = sbr.rel (%p182) target = $region36
        $region35: #{tpu_custom_call.1} parent=31 // pred_region
          %185 = dma.done %s178, 512
        $region36: #{tpu_custom_call.1} parent=31 // pred_fallthru
          _
        %s186 = sand.u32 %s42, 1
        %s187 = scalar_lea.sflag [#allocation4], %s186
        %s188 = sand.u32 %s42, 1
        %s189 = smul.addr %s188, 32
        %s190 = scalar_lea.vmem [#allocation3], %s189
        %p191 = pneg %p55
        %p192 = pneg %p52
        %p193 = pneg %p76
        %p194 = pneg %p73
        %p195 = pneg %p97
        %p196 = pneg %p94
        %p197 = pneg %p123
        %p198 = pneg %p120
        %s199 = sand.u32 %s110, 1
        %s200 = scalar_lea.sflag [#allocation5], %s199
        %s201 = sand.u32 %s110, 1
        %s202 = scalar_lea.vmem [#allocation6], %s201
        %p203 = scmp.eq.s32.totalorder %s25, 0
        // Predicated region
        $region37: #{tpu_custom_call.1} parent=31 // pred_check
          %p204 = pneg %p203
        $region38: #{tpu_custom_call.1} parent=31 // pred_check_branch
          %206 = sbr.rel (%p204) target = $region40
        $region39: #{tpu_custom_call.1} parent=31 // pred_region
          %207 = vst [vmem:[#allocation2] sm:$0xff] 0.0
          %208 = vst [vmem:[#allocation2 + $0x8] sm:$0xff] 0.0
          %209 = vst [vmem:[#allocation2 + $0x10] sm:$0xff] 0.0
          %210 = vst [vmem:[#allocation2 + $0x18] sm:$0xff] 0.0
        $region40: #{tpu_custom_call.1} parent=31 // pred_fallthru
          _
        %v211 = vld [vmem:[%s181] sm:$0xff]
        %v212 = vld [vmem:[%s181 + $0x8] sm:$0xff]
        %v213 = vld [vmem:[%s181 + $0x10] sm:$0xff]
        %v214 = vld [vmem:[%s181 + $0x18] sm:$0xff]
        %v215 = vld [vmem:[#allocation2] sm:$0xff]
        %v216 = vld [vmem:[#allocation2 + $0x8] sm:$0xff]
        %v217 = vld [vmem:[#allocation2 + $0x10] sm:$0xff]
        %v218 = vld [vmem:[#allocation2 + $0x18] sm:$0xff]
        %v219 = vadd.f32 %v215, %v211
        %v220 = vadd.f32 %v216, %v212
        %v221 = vadd.f32 %v217, %v213
        %v222 = vadd.f32 %v218, %v214
        %223 = vst [vmem:[#allocation2] sm:$0xff] %v219
        %224 = vst [vmem:[#allocation2 + $0x8] sm:$0xff] %v220
        %225 = vst [vmem:[#allocation2 + $0x10] sm:$0xff] %v221
        %226 = vst [vmem:[#allocation2 + $0x18] sm:$0xff] %v222
        %p227 = scmp.eq.s32.totalorder %s25, 1
        // Predicated region
        $region41: #{tpu_custom_call.1} parent=31 // pred_check
          %p228 = pneg %p227
        $region42: #{tpu_custom_call.1} parent=31 // pred_check_branch
          %230 = sbr.rel (%p228) target = $region44
        $region43: #{tpu_custom_call.1} parent=31 // pred_region
          %v231 = vld [vmem:[#allocation2] sm:$0xff]
          %v232 = vld [vmem:[#allocation2 + $0x8] sm:$0xff]
          %v233 = vld [vmem:[#allocation2 + $0x10] sm:$0xff]
          %v234 = vld [vmem:[#allocation2 + $0x18] sm:$0xff]
          %235 = vadd.xlane.f32.xlu0 %v231
          %v236 = vpop.xlane.xlu0 %235
          %237 = vadd.xlane.f32.xlu0 %v232
          %v238 = vpop.xlane.xlu0 %237
          %239 = vadd.xlane.f32.xlu0 %v233
          %v240 = vpop.xlane.xlu0 %239
          %241 = vadd.xlane.f32.xlu0 %v234
          %v242 = vpop.xlane.xlu0 %241
          %v243 = vmul.f32 %v236, 0.00390625
          %v244 = vmul.f32 %v238, 0.00390625
          %v245 = vmul.f32 %v240, 0.00390625
          %v246 = vmul.f32 %v242, 0.00390625
          %v247 = vld [vmem:[%s1] sm:$0xff]
          %v248 = vld [vmem:[%s1 + $0x8] sm:$0xff]
          %v249 = vld [vmem:[%s1 + $0x10] sm:$0xff]
          %v250 = vld [vmem:[%s1 + $0x18] sm:$0xff]
          %v255 = vlaneseq
          %v256 = vand.u32 %v255, 127
          %v257 = vlaneseq
          %v258 = vshrl.u32 %v257, 7
          %v259 = vsub.s32 %v256, %v258
          %v260 = vrot.slane %v243, %v259
          %v261 = vadd.s32 %v256, 4294967288
          %v262 = vlaneseq
          %v263 = vshrl.u32 %v262, 7
          %v264 = vsub.s32 %v261, %v263
          %v265 = vrot.slane %v244, %v264
          %vm266 = vcmask 130112
          %v267 = vsel %vm266, %v265, %v260
          %v268 = vadd.s32 %v256, 4294967280
          %v269 = vlaneseq
          %v270 = vshrl.u32 %v269, 7
          %v271 = vsub.s32 %v268, %v270
          %v272 = vrot.slane %v245, %v271
          %vm273 = vcmask 195712
          %v274 = vsel %vm273, %v272, %v267
          %v275 = vadd.s32 %v256, 4294967272
          %v276 = vlaneseq
          %v277 = vshrl.u32 %v276, 7
          %v278 = vsub.s32 %v275, %v277
          %v279 = vrot.slane %v246, %v278
          %vm280 = vcmask 261312
          %v281 = vsel %vm280, %v279, %v274
          %vm282 = vcmask 261120
          %v283 = vsel %vm282, %v281, 0
          %285 = vmatprep.subr.mxu0 0.0
          %286 = vmatpush1.msra.mxu0 %v247
          %287 = vmatprep.subr.mxu0 0.0
          %288 = vmatpush1.msra.mxu0 %v248
          %289 = vmatprep.subr.mxu0 0.0
          %290 = vmatpush1.msra.mxu0 %v249
          %291 = vmatprep.subr.mxu0 0.0
          %292 = vmatpush1.msra.mxu0 %v250
          %293 = vmatprep.subr.mxu0 0.0
          %294 = vmatpush1.msra.mxu0 0.0
          %295 = vmatprep.subr.mxu0 0.0
          %296 = vmatpush1.msra.mxu0 0.0
          %297 = vmatprep.subr.mxu0 0.0
          %298 = vmatpush1.msra.mxu0 0.0
          %299 = vmatprep.subr.mxu0 0.0
          %300 = vmatpush1.msra.mxu0 0.0
          %301 = vmatprep.subr.mxu0 0.0
          %302 = vmatpush1.msra.mxu0 0.0
          %303 = vmatprep.subr.mxu0 0.0
          %304 = vmatpush1.msra.mxu0 0.0
          %305 = vmatprep.subr.mxu0 0.0
          %306 = vmatpush1.msra.mxu0 0.0
          %307 = vmatprep.subr.mxu0 0.0
          %308 = vmatpush1.msra.mxu0 0.0
          %309 = vmatprep.subr.mxu0 0.0
          %310 = vmatpush1.msra.mxu0 0.0
          %311 = vmatprep.subr.mxu0 0.0
          %312 = vmatpush1.msra.mxu0 0.0
          %313 = vmatprep.subr.mxu0 0.0
          %314 = vmatpush1.msra.mxu0 0.0
          %315 = vmatprep.subr.mxu0 0.0
          %316 = vmatpush1.msra.mxu0 0.0
          %317 = vmatprep.subr.mxu0 0.0
          %318 = vmatpush1.msra.mxu0 0.0
          %319 = vmatprep.subr.mxu0 0.0
          %320 = vmatpush1.msra.mxu0 0.0
          %321 = vmatprep.subr.mxu0 0.0
          %322 = vmatpush1.msra.mxu0 0.0
          %323 = vmatprep.subr.mxu0 0.0
          %324 = vmatpush1.msra.mxu0 0.0
          %325 = vmatprep.subr.mxu0 0.0
          %326 = vmatpush1.msra.mxu0 0.0
          %327 = vmatprep.subr.mxu0 0.0
          %328 = vmatpush1.msra.mxu0 0.0
          %329 = vmatprep.subr.mxu0 0.0
          %330 = vmatpush1.msra.mxu0 0.0
          %331 = vmatprep.subr.mxu0 0.0
          %332 = vmatpush1.msra.mxu0 0.0
          %333 = vmatprep.subr.mxu0 0.0
          %334 = vmatpush1.msra.mxu0 0.0
          %335 = vmatprep.subr.mxu0 0.0
          %336 = vmatpush1.msra.mxu0 0.0
          %337 = vmatprep.subr.mxu0 0.0
          %338 = vmatpush1.msra.mxu0 0.0
          %339 = vmatprep.subr.mxu0 0.0
          %340 = vmatpush1.msra.mxu0 0.0
          %341 = vmatprep.subr.mxu0 0.0
          %342 = vmatpush1.msra.mxu0 0.0
          %343 = vmatprep.subr.mxu0 0.0
          %344 = vmatpush1.msra.mxu0 0.0
          %345 = vmatprep.subr.mxu0 0.0
          %346 = vmatpush1.msra.mxu0 0.0
          %347 = vmatprep.subr.mxu0 0.0
          %348 = vmatpush1.msra.mxu0 0.0
          %349 = vmatprep.mubr.f32.mxu0 0.0
          %350 = vmatmul.mubr.f32.gmra.mrb[0].mxu0 %v283
          %v351 = vpop.f32.mrb[0].mxu0
          %v352 = vadd.f32 0.0, %v351
          %v353 = vpop.f32.mrb[0].mxu0
          %354 = vdwg.mxu0
          %v355 = vmax.f32 %v352, 0.0
          %v356 = vld [vmem:[%s2] sm:$0x3]
          %vm357 = vcmask 15360
          %v359 = vsel %vm357, %v355, 0
          %vm361 = vcmask 1041408
          %v363 = vsel %vm361, %v356, 0
          %365 = vmatprep.subr.mxu0 0.0
          %366 = vmatpush1.msra.mxu0 %v363
          %367 = vmatprep.subr.mxu0 0.0
          %368 = vmatpush1.msra.mxu0 0.0
          %369 = vmatprep.subr.mxu0 0.0
          %370 = vmatpush1.msra.mxu0 0.0
          %371 = vmatprep.subr.mxu0 0.0
          %372 = vmatpush1.msra.mxu0 0.0
          %373 = vmatprep.subr.mxu0 0.0
          %374 = vmatpush1.msra.mxu0 0.0
          %375 = vmatprep.subr.mxu0 0.0
          %376 = vmatpush1.msra.mxu0 0.0
          %377 = vmatprep.subr.mxu0 0.0
          %378 = vmatpush1.msra.mxu0 0.0
          %379 = vmatprep.subr.mxu0 0.0
          %380 = vmatpush1.msra.mxu0 0.0
          %381 = vmatprep.subr.mxu0 0.0
          %382 = vmatpush1.msra.mxu0 0.0
          %383 = vmatprep.subr.mxu0 0.0
          %384 = vmatpush1.msra.mxu0 0.0
          %385 = vmatprep.subr.mxu0 0.0
          %386 = vmatpush1.msra.mxu0 0.0
          %387 = vmatprep.subr.mxu0 0.0
          %388 = vmatpush1.msra.mxu0 0.0
          %389 = vmatprep.subr.mxu0 0.0
          %390 = vmatpush1.msra.mxu0 0.0
          %391 = vmatprep.subr.mxu0 0.0
          %392 = vmatpush1.msra.mxu0 0.0
          %393 = vmatprep.subr.mxu0 0.0
          %394 = vmatpush1.msra.mxu0 0.0
          %395 = vmatprep.subr.mxu0 0.0
          %396 = vmatpush1.msra.mxu0 0.0
          %397 = vmatprep.subr.mxu0 0.0
          %398 = vmatpush1.msra.mxu0 0.0
          %399 = vmatprep.subr.mxu0 0.0
          %400 = vmatpush1.msra.mxu0 0.0
          %401 = vmatprep.subr.mxu0 0.0
          %402 = vmatpush1.msra.mxu0 0.0
          %403 = vmatprep.subr.mxu0 0.0
          %404 = vmatpush1.msra.mxu0 0.0
          %405 = vmatprep.subr.mxu0 0.0
          %406 = vmatpush1.msra.mxu0 0.0
          %407 = vmatprep.subr.mxu0 0.0
          %408 = vmatpush1.msra.mxu0 0.0
          %409 = vmatprep.subr.mxu0 0.0
          %410 = vmatpush1.msra.mxu0 0.0
          %411 = vmatprep.subr.mxu0 0.0
          %412 = vmatpush1.msra.mxu0 0.0
          %413 = vmatprep.subr.mxu0 0.0
          %414 = vmatpush1.msra.mxu0 0.0
          %415 = vmatprep.subr.mxu0 0.0
          %416 = vmatpush1.msra.mxu0 0.0
          %417 = vmatprep.subr.mxu0 0.0
          %418 = vmatpush1.msra.mxu0 0.0
          %419 = vmatprep.subr.mxu0 0.0
          %420 = vmatpush1.msra.mxu0 0.0
          %421 = vmatprep.subr.mxu0 0.0
          %422 = vmatpush1.msra.mxu0 0.0
          %423 = vmatprep.subr.mxu0 0.0
          %424 = vmatpush1.msra.mxu0 0.0
          %425 = vmatprep.subr.mxu0 0.0
          %426 = vmatpush1.msra.mxu0 0.0
          %427 = vmatprep.subr.mxu0 0.0
          %428 = vmatpush1.msra.mxu0 0.0
          %429 = vmatprep.mubr.f32.mxu0 0.0
          %430 = vmatmul.mubr.f32.gmra.mrb[0].mxu0 %v359
          %v431 = vpop.f32.mrb[0].mxu0
          %v432 = vadd.f32 0.0, %v431
          %v433 = vpop.f32.mrb[0].mxu0
          %434 = vdwg.mxu0
          %v435 = vxor.u32 %v432, 2147483648
          %v436 = vmul.f32 %v435, 1.442695
          %v437 = vpow.pop %v436
          %v438 = vadd.f32 %v437, 1.0
          %v439 = vrcp.pop %v438
          %v440 = vmul.f32 1.0, %v439
          %vm441 = vcmask 253952
          %442 = vst.msk [vmem:[%s202] sm:$0x1] %vm441, %v440
        $region44: #{tpu_custom_call.1} parent=31 // pred_fallthru
          _
        %s443 = sand.u32 %s110, 1
        %s444 = scalar_lea.sflag [#allocation5], %s443
        %s445 = sand.u32 %s110, 1
        %s446 = scalar_lea.vmem [#allocation6], %s445
        // Predicated region
        $region45: #{tpu_custom_call.1} parent=31 // pred_check
          %p447 = pneg %p120
        $region46: #{tpu_custom_call.1} parent=31 // pred_check_branch
          %449 = sbr.rel (%p447) target = $region48
        $region47: #{tpu_custom_call.1} parent=31 // pred_region
          %s451 = ssub.s32 16, 16
          %452 = vsyncadd %s444, %s451
          %s453 = smul.addr %s24, 16
          %s454 = scalar_lea.hbm %s3, %s453
          %s456 = sshll.u32 %s446, 4
          %s457 = int_to_ptr.vmem [resolvable:$true] %s456
          %459 = dma.vmem_to_hbm [thread:$0]  %s457, 16, %s454, %s444
        $region48: #{tpu_custom_call.1} parent=31 // pred_fallthru
          _
      $region32: #{tpu_custom_call.1} parent=5 // pred_fallthru
        _
      %p460 = scmp.le.s32.totalorder 2, %s15
      // Predicated region
      $region49: #{tpu_custom_call.1} parent=5 // pred_check
        %p461 = pneg %p460
      $region50: #{tpu_custom_call.1} parent=5 // pred_check_branch
        %463 = sbr.rel (%p461) target = $region52
      $region51: #{tpu_custom_call.1} parent=5 // pred_region
        %s464 = ssub.s32 %s15, 2
        // Predicated region
        $region53: #{tpu_custom_call.1} parent=51 // pred_check
          %p465 = pneg %p126
        $region54: #{tpu_custom_call.1} parent=51 // pred_check_branch
          %467 = sbr.rel (%p465) target = $region56
        $region55: #{tpu_custom_call.1} parent=51 // pred_region
          %s468 = sand.u32 %s111, 1
          %s469 = scalar_lea.sflag [#allocation5], %s468
          %s470 = sand.u32 %s111, 1
          %s471 = scalar_lea.vmem [#allocation6], %s470
          %472 = dma.done %s469, 16
        $region56: #{tpu_custom_call.1} parent=51 // pred_fallthru
          _
      $region52: #{tpu_custom_call.1} parent=5 // pred_fallthru
        _
    $region6: #{tpu_custom_call.1} parent=1 // loop_footer
      %s19 = sadd.s32 1, %s15
    $region7: #{tpu_custom_call.1} parent=1 // loop_footer_branch
      %14 = sbr.rel target = $region3
    $region8: #{tpu_custom_call.1} parent=1 // loop_exit
      _
    %473 = vsyncpa [#allocation4], 1
    %s474 = scalar_lea.sflag [#allocation4], 1
    %475 = vsyncpa %s474, 1
    %476 = vsyncpa [#allocation5], 1
    %s477 = scalar_lea.sflag [#allocation5], 1
    %478 = vsyncpa %s477, 1

</llo_original>
